<compile_context>
chip_gen: v6e
topology: v6e:2x2x1
jax: 0.10.0
libtpu: 0.0.40
codegen_flags: <defaults>
</compile_context>

<pallas_src>
import functools

import jax
import jax.numpy as jnp
from jax.experimental import pallas as pl
from jax.experimental.pallas import tpu as pltpu


def _chip_config():
    """Return (tensorcores_per_chip, core_axis_semantic, target_block_bytes, vmem_limit)."""
    kind = ""
    try:
        dev = jax.devices()[0]
        if dev.platform == "tpu":
            kind = str(getattr(dev, "device_kind", "")).lower()
    except Exception:
        pass
    if ("v7" in kind) or ("7x" in kind):
        # v7x: 2 TensorCores/chip, ~3.2 TB/s HBM -> larger blocks + guaranteed split.
        sem = getattr(pltpu, "CORE_PARALLEL", "parallel")
        return 2, sem, 8 << 20, 48 << 20
    if ("v4" in kind) or ("v5p" in kind):
        # Megacore chips: plain "parallel" shards the axis across the 2 TCs.
        return 2, "parallel", 4 << 20, 32 << 20
    # v5e / v6e (and unknown): single TensorCore.
    return 1, "arbitrary", 4 << 20, 32 << 20


def _poisson_sum_kernel(out_ref, tgt_ref, sum_ref, acc_ref, *, bias, block_rows,
                        col_tile, rows_total, width_total, blocks_per_core,
                        row_edge_start, mask_rows, mask_cols):
    """Per-column Poisson-loss sums for one (core, column-tile) pair.

    out_ref/tgt_ref: (block_rows, col_tile) input tiles.
    sum_ref:         (1, 1, col_tile) output block -> per-(core, col-tile) sums.
    acc_ref:         (1, col_tile) f32 VMEM accumulator, resident across the
                     row-block (last, "arbitrary") grid axis.
    """
    c = pl.program_id(0)   # TensorCore split              (core axis)
    j = pl.program_id(1)   # column tile                   ("parallel")
    i = pl.program_id(2)   # row blocks within this core   ("arbitrary" reduction)

    @pl.when(i == 0)
    def _():
        acc_ref[...] = jnp.zeros_like(acc_ref)

    o = out_ref[...].astype(jnp.float32)
    t = tgt_ref[...].astype(jnp.float32)
    loss = o - t * jnp.log(o + jnp.float32(bias))

    if mask_rows or mask_cols:
        blk = c * blocks_per_core + i
        edge = None
        if mask_rows:
            edge = blk >= row_edge_start
        if mask_cols:
            col_edge = j == (pl.num_programs(1) - 1)
            edge = col_edge if edge is None else jnp.logical_or(edge, col_edge)

        # Fast path: interior blocks accumulate without any mask VALU work.
        @pl.when(jnp.logical_not(edge))
        def _():
            acc_ref[...] += jnp.sum(loss, axis=0, keepdims=True)

        # Edge path: ragged / clamped (duplicate) blocks.  jnp.where *selects*
        # 0 for padded rows/lanes, so NaN/Inf from undefined padding is dropped.
        @pl.when(edge)
        def _():
            mask = None
            if mask_rows:
                row0 = blk * block_rows
                row_ids = row0 + jax.lax.broadcasted_iota(jnp.int32, loss.shape, 0)
                mask = row_ids < rows_total
            if mask_cols:
                col0 = j * col_tile
                col_ids = col0 + jax.lax.broadcasted_iota(jnp.int32, loss.shape, 1)
                col_ok = col_ids < width_total
                mask = col_ok if mask is None else jnp.logical_and(mask, col_ok)
            acc_ref[...] += jnp.sum(jnp.where(mask, loss, 0.0), axis=0, keepdims=True)
    else:
        acc_ref[...] += jnp.sum(loss, axis=0, keepdims=True)

    @pl.when(i == pl.num_programs(2) - 1)
    def _():
        sum_ref[0] = acc_ref[...]


def poisson_loss(output, target, *, bias=1e-12, per_neuron=False,
                 block_rows=None, max_width=1024, _force_num_cores=None):
    """Pallas TPU implementation of PoissonLoss.forward."""
    n = output.shape[-1]
    total = int(output.size)
    rows = total // n                     # logical rows of loss.view(-1, n)

    # ---- lane-dense packing: g logical rows per physical row ----------------
    # For per_neuron we must keep whole logical rows per physical row (fold back
    # with a (g, n) reshape); for the scalar mean any row-major repacking works.
    n_pack = n if per_neuron else 1
    rows_pack = rows if per_neuron else total
    g = 1
    if n_pack < max_width:
        g_cap = min(rows_pack, max_width // n_pack)
        best_aligned, best_any = None, None
        for cand in range(g_cap, 0, -1):
            if rows_pack % cand == 0:
                if best_any is None:
                    best_any = cand
                if (cand * n_pack) % 128 == 0:   # prefer full-lane (128-aligned) width
                    best_aligned = cand
                    break
        g = best_aligned if best_aligned is not None else (best_any or 1)
    width = g * n_pack
    packed_rows = rows_pack // g
    out2 = output.reshape(packed_rows, width)
    tgt2 = target.reshape(packed_rows, width)

    # ---- column tiling (only triggers when the packed width is very wide) ---
    if width <= max_width:
        col_tile, num_col_blocks = width, 1
        mask_cols = False
    else:
        col_tile = max_width                      # multiple of 128
        num_col_blocks = pl.cdiv(width, col_tile)
        mask_cols = (width % col_tile) != 0
    padded_width = num_col_blocks * col_tile      # only the tiny OUTPUT is padded

    itemsize = output.dtype.itemsize
    sub = max(8, 32 // max(1, itemsize))          # 8 for f32, 16 for bf16

    def _run(num_cores_req, core_sem, target_bytes, vmem_limit):
        # ---- byte-based row blocks (bf16 gets 2x the rows automatically) ----
        if block_rows is not None:
            rows_target = block_rows
        else:
            rows_target = max(sub, target_bytes // max(1, col_tile * itemsize))
        if packed_rows < sub:
            blk_rows = packed_rows                # full-extent row block
        else:
            blk_rows = min(max(sub, (rows_target // sub) * sub),
                           (packed_rows // sub) * sub)
        num_row_blocks = pl.cdiv(packed_rows, blk_rows)

        # ---- core split (only on chips that actually have 2 TensorCores) ----
        num_cores = num_cores_req if num_row_blocks > 1 else 1
        num_cores = min(num_cores, num_row_blocks)
        blocks_per_core = pl.cdiv(num_row_blocks, num_cores)
        core_sem_used = core_sem if num_cores > 1 else "arbitrary"

        mask_rows = (num_cores * blocks_per_core * blk_rows) != packed_rows
        ragged_rows = (num_row_blocks * blk_rows) != packed_rows
        row_edge_start = (num_row_blocks - 1) if ragged_rows else num_row_blocks
        need_clamp = (num_cores * blocks_per_core) > num_row_blocks

        if need_clamp:
            def row_block(c, i):
                # Fully out-of-range blocks re-read the last valid block; the
                # kernel masks them to zero (row0 uses the *logical* index).
                return jnp.minimum(c * blocks_per_core + i, num_row_blocks - 1)
        else:
            def row_block(c, i):
                return c * blocks_per_core + i

        in_spec = pl.BlockSpec((blk_rows, col_tile),
                               lambda c, j, i: (row_block(c, i), j))
        out_spec = pl.BlockSpec((1, 1, col_tile), lambda c, j, i: (c, 0, j))

        kernel = functools.partial(
            _poisson_sum_kernel, bias=bias, block_rows=blk_rows,
            col_tile=col_tile, rows_total=packed_rows, width_total=width,
            blocks_per_core=blocks_per_core, row_edge_start=row_edge_start,
            mask_rows=mask_rows, mask_cols=mask_cols)

        return pl.pallas_call(
            kernel,
            out_shape=jax.ShapeDtypeStruct((num_cores, 1, padded_width),
                                           jnp.float32),
            grid_spec=pltpu.PrefetchScalarGridSpec(
                num_scalar_prefetch=0,
                grid=(num_cores, num_col_blocks, blocks_per_core),
                in_specs=[in_spec, in_spec],
                out_specs=out_spec,
                scratch_shapes=[pltpu.VMEM((1, col_tile), jnp.float32)],
            ),
            compiler_params=pltpu.CompilerParams(
                dimension_semantics=(core_sem_used, "parallel", "arbitrary"),
                vmem_limit_bytes=vmem_limit,
            ),
        )(out2, tgt2)                              # (num_cores, 1, padded_width)

    det_cores, det_sem, det_bytes, det_limit = _chip_config()
    if _force_num_cores is not None:
        cfg = (int(_force_num_cores), "parallel", det_bytes, det_limit)
    else:
        cfg = (det_cores, det_sem, det_bytes, det_limit)
    safe_cfg = (1, "arbitrary", 2 << 20, 32 << 20)
    try:
        partial_sums = _run(*cfg)
    except Exception:
        if cfg == safe_cfg:
            raise
        # Conservative fallback (1 core, small blocks) if the aggressive
        # chip-specific configuration fails to lower on this chip.
        partial_sums = _run(*safe_cfg)

    col_sums = jnp.sum(partial_sums, axis=(0, 1))[:width]    # (width,) f32

    if per_neuron:
        neuron_sums = (jnp.sum(col_sums.reshape(g, n), axis=0)
                       if g > 1 else col_sums)
        return (neuron_sums / jnp.float32(rows)).astype(output.dtype)
    total_sum = jnp.sum(col_sums)
    return (total_sum / jnp.float32(total)).astype(output.dtype)


if __name__ == "__main__":
    key = jax.random.PRNGKey(0)

    def make_inputs(k, shape, dtype=jnp.float32):
        k1, k2 = jax.random.split(k)
        out = jax.random.uniform(k1, shape, dtype=jnp.float32, minval=0.1, maxval=2.0)
        tgt = jnp.floor(jax.random.uniform(k2, shape, dtype=jnp.float32,
                                           minval=0.0, maxval=5.0))
        return out.astype(dtype), tgt.astype(dtype)

    def ref_loss(out, tgt, per_neuron, bias=1e-12):
        o = out.astype(jnp.float32)
        t = tgt.astype(jnp.float32)
        l = o - t * jnp.log(o + bias)
        if per_neuron:
            return jnp.mean(l.reshape(-1, out.shape[-1]), axis=0)
        return jnp.mean(l)

    cases = [
        ((2, 4, 16, 16), {}),                                    # lane-packed, tiny rows
        ((22, 16, 64), {}),                                      # ragged last row block
        ((40, 200), {"max_width": 128}),                         # column tiling + lane mask
        ((8, 64, 32), {"block_rows": 8, "max_width": 128}),      # many row blocks, no masks
        ((23, 128), {"block_rows": 8, "_force_num_cores": 2}),   # 2-core split + clamped dup
    ]

    keys = jax.random.split(key, len(cases) + 1)
    for (shape, kw), k in zip(cases, keys[:-1]):
        out, tgt = make_inputs(k, shape)
        for per_neuron in (False, True):
            got = poisson_loss(out, tgt, per_neuron=per_neuron, **kw)
            jax.block_until_ready(got)
            want = ref_loss(out, tgt, per_neuron)
            assert got.shape == want.shape, (shape, per_neuron, got.shape, want.shape)
            assert jnp.allclose(got, want, rtol=1e-5, atol=1e-5), (shape, per_neuron)

    # bf16 inputs: byte-based sizing doubles block rows; math stays f32 in-kernel.
    out16, tgt16 = make_inputs(keys[-1], (2, 4, 16, 16), dtype=jnp.bfloat16)
    got16 = poisson_loss(out16, tgt16, per_neuron=True)
    jax.block_until_ready(got16)
    want16 = ref_loss(out16, tgt16, True)
    assert jnp.allclose(got16.astype(jnp.float32), want16, rtol=2e-2, atol=2e-2)

    print("KERNEL_OK")
</pallas_src>

<mosaic_0001>
module attributes {stable_mosaic.version = 11 : i64} {
  func.func @_poisson_sum_kernel(%arg0: i32, %arg1: i32, %arg2: i32, %arg3: memref<2x1024xf32, #tpu.memory_space<vmem>>, %arg4: memref<2x1024xf32, #tpu.memory_space<vmem>>, %arg5: memref<1x1x1024xf32, #tpu.memory_space<vmem>>, %arg6: memref<1x1024xf32, #tpu.memory_space<vmem>>) attributes {dimension_semantics = [#tpu.dimension_semantics<arbitrary>, #tpu.dimension_semantics<parallel>, #tpu.dimension_semantics<arbitrary>], iteration_bounds = array<i64: 1, 1, 1>, scalar_prefetch = 0 : i64, scratch_operands = 1 : i64, tpu.core_type = #tpu.core_type<tc>, window_params = [{transform_indices = @transform_0, window_bounds = array<i64: 2, 1024>}, {transform_indices = @transform_1, window_bounds = array<i64: 2, 1024>}, {transform_indices = @transform_2, window_bounds = array<i64: 1, 1, 1024>}]} {
    %c0_i32 = arith.constant 0 : i32
    %0 = arith.cmpi eq, %arg2, %c0_i32 : i32
    %1 = arith.extui %0 : i1 to i32
    %c0_i32_0 = arith.constant 0 : i32
    %2 = arith.cmpi ne, %1, %c0_i32_0 : i32
    scf.if %2 {
      %cst_11 = arith.constant 0.000000e+00 : f32
      %18 = vector.broadcast %cst_11 : f32 to vector<1x1024xf32>
      %c0_12 = arith.constant 0 : index
      %c0_13 = arith.constant 0 : index
      %19 = vector.load %arg6[%c0_12, %c0_13] : memref<1x1024xf32, #tpu.memory_space<vmem>>, vector<1x1024xf32>
      tpu.vector_store %arg6[%c0_12, %c0_13], %18 {strides = array<i32>} : memref<1x1024xf32, #tpu.memory_space<vmem>>, vector<1x1024xf32>,
    } else {
    }
    %c0 = arith.constant 0 : index
    %c0_1 = arith.constant 0 : index
    %3 = vector.load %arg3[%c0, %c0_1] : memref<2x1024xf32, #tpu.memory_space<vmem>>, vector<2x1024xf32>
    %c0_2 = arith.constant 0 : index
    %c0_3 = arith.constant 0 : index
    %4 = vector.load %arg4[%c0_2, %c0_3] : memref<2x1024xf32, #tpu.memory_space<vmem>>, vector<2x1024xf32>
    %cst = arith.constant 9.99999996E-13 : f32
    %5 = vector.broadcast %cst : f32 to vector<2x1024xf32>
    %6 = arith.addf %3, %5 : vector<2x1024xf32>
    %7 = math.log %6 : vector<2x1024xf32>
    %8 = arith.mulf %4, %7 : vector<2x1024xf32>
    %9 = arith.subf %3, %8 : vector<2x1024xf32>
    %c0_4 = arith.constant 0 : index
    %c0_5 = arith.constant 0 : index
    %10 = vector.load %arg6[%c0_4, %c0_5] : memref<1x1024xf32, #tpu.memory_space<vmem>>, vector<1x1024xf32>
    %cst_6 = arith.constant dense<0.000000e+00> : vector<1024xf32>
    %11 = vector.multi_reduction <add>, %9, %cst_6 [0] : vector<2x1024xf32> to vector<1024xf32>
    %12 = vector.shape_cast %11 : vector<1024xf32> to vector<1x1024xf32>
    %13 = arith.addf %10, %12 : vector<1x1024xf32>
    %c0_7 = arith.constant 0 : index
    %c0_8 = arith.constant 0 : index
    %14 = vector.load %arg6[%c0_7, %c0_8] : memref<1x1024xf32, #tpu.memory_space<vmem>>, vector<1x1024xf32>
    tpu.vector_store %arg6[%c0_7, %c0_8], %13 {strides = array<i32>} : memref<1x1024xf32, #tpu.memory_space<vmem>>, vector<1x1024xf32>,
    %c0_i32_9 = arith.constant 0 : i32
    %15 = arith.cmpi eq, %arg2, %c0_i32_9 : i32
    %16 = arith.extui %15 : i1 to i32
    %c0_i32_10 = arith.constant 0 : i32
    %17 = arith.cmpi ne, %16, %c0_i32_10 : i32
    scf.if %17 {
      %c0_11 = arith.constant 0 : index
      %c0_12 = arith.constant 0 : index
      %18 = vector.load %arg6[%c0_11, %c0_12] : memref<1x1024xf32, #tpu.memory_space<vmem>>, vector<1x1024xf32>
      %c0_13 = arith.constant 0 : index
      %c0_14 = arith.constant 0 : index
      %c0_15 = arith.constant 0 : index
      %19 = vector.load %arg5[%c0_13, %c0_14, %c0_15] : memref<1x1x1024xf32, #tpu.memory_space<vmem>>, vector<1x1x1024xf32>
      %20 = vector.shape_cast %19 : vector<1x1x1024xf32> to vector<1x1024xf32>
      %21 = vector.shape_cast %18 : vector<1x1024xf32> to vector<1x1x1024xf32>
      tpu.vector_store %arg5[%c0_13, %c0_14, %c0_15], %21 {strides = array<i32>} : memref<1x1x1024xf32, #tpu.memory_space<vmem>>, vector<1x1x1024xf32>,
    } else {
    }
    return
  }
  func.func @transform_0(%arg0: i32, %arg1: i32, %arg2: i32) -> (i32, i32) {
    %c1_i32 = arith.constant 1 : i32
    %0 = arith.muli %arg0, %c1_i32 : i32
    %1 = arith.addi %0, %arg2 : i32
    %c0_i32 = arith.constant 0 : i32
    return %1, %arg1 : i32, i32
  }
  func.func @transform_1(%arg0: i32, %arg1: i32, %arg2: i32) -> (i32, i32) {
    %c1_i32 = arith.constant 1 : i32
    %0 = arith.muli %arg0, %c1_i32 : i32
    %1 = arith.addi %0, %arg2 : i32
    %c0_i32 = arith.constant 0 : i32
    return %1, %arg1 : i32, i32
  }
  func.func @transform_2(%arg0: i32, %arg1: i32, %arg2: i32) -> (i32, i32, i32) {
    %c0_i32 = arith.constant 0 : i32
    %c0_i32_0 = arith.constant 0 : i32
    return %arg0, %c0_i32, %arg1 : i32, i32, i32
  }
}

module attributes {stable_mosaic.version = 11 : i64} {
  func.func @_poisson_sum_kernel(%arg0: i32, %arg1: i32, %arg2: i32, %arg3: memref<2x1024xf32, #tpu.memory_space<vmem>>, %arg4: memref<2x1024xf32, #tpu.memory_space<vmem>>, %arg5: memref<1x1x1024xf32, #tpu.memory_space<vmem>>, %arg6: memref<1x1024xf32, #tpu.memory_space<vmem>>) attributes {dimension_semantics = [#tpu.dimension_semantics<arbitrary>, #tpu.dimension_semantics<parallel>, #tpu.dimension_semantics<arbitrary>], iteration_bounds = array<i64: 1, 1, 1>, scalar_prefetch = 0 : i64, scratch_operands = 1 : i64, tpu.core_type = #tpu.core_type<tc>, window_params = [{transform_indices = @transform_0, window_bounds = array<i64: 2, 1024>}, {transform_indices = @transform_1, window_bounds = array<i64: 2, 1024>}, {transform_indices = @transform_2, window_bounds = array<i64: 1, 1, 1024>}]} {
    %c0_i32 = arith.constant 0 : i32
    %0 = arith.cmpi eq, %arg2, %c0_i32 : i32
    %1 = arith.extui %0 : i1 to i32
    %c0_i32_0 = arith.constant 0 : i32
    %2 = arith.cmpi ne, %1, %c0_i32_0 : i32
    scf.if %2 {
      %cst_11 = arith.constant 0.000000e+00 : f32
      %18 = vector.broadcast %cst_11 : f32 to vector<1x1024xf32>
      %c0_12 = arith.constant 0 : index
      %c0_13 = arith.constant 0 : index
      %19 = vector.load %arg6[%c0_12, %c0_13] : memref<1x1024xf32, #tpu.memory_space<vmem>>, vector<1x1024xf32>
      tpu.vector_store %arg6[%c0_12, %c0_13], %18 {strides = array<i32>} : memref<1x1024xf32, #tpu.memory_space<vmem>>, vector<1x1024xf32>,
    } else {
    }
    %c0 = arith.constant 0 : index
    %c0_1 = arith.constant 0 : index
    %3 = vector.load %arg3[%c0, %c0_1] : memref<2x1024xf32, #tpu.memory_space<vmem>>, vector<2x1024xf32>
    %c0_2 = arith.constant 0 : index
    %c0_3 = arith.constant 0 : index
    %4 = vector.load %arg4[%c0_2, %c0_3] : memref<2x1024xf32, #tpu.memory_space<vmem>>, vector<2x1024xf32>
    %cst = arith.constant 9.99999996E-13 : f32
    %5 = vector.broadcast %cst : f32 to vector<2x1024xf32>
    %6 = arith.addf %3, %5 : vector<2x1024xf32>
    %7 = math.log %6 : vector<2x1024xf32>
    %8 = arith.mulf %4, %7 : vector<2x1024xf32>
    %9 = arith.subf %3, %8 : vector<2x1024xf32>
    %c0_4 = arith.constant 0 : index
    %c0_5 = arith.constant 0 : index
    %10 = vector.load %arg6[%c0_4, %c0_5] : memref<1x1024xf32, #tpu.memory_space<vmem>>, vector<1x1024xf32>
    %cst_6 = arith.constant dense<0.000000e+00> : vector<1024xf32>
    %11 = vector.multi_reduction <add>, %9, %cst_6 [0] : vector<2x1024xf32> to vector<1024xf32>
    %12 = vector.shape_cast %11 : vector<1024xf32> to vector<1x1024xf32>
    %13 = arith.addf %10, %12 : vector<1x1024xf32>
    %c0_7 = arith.constant 0 : index
    %c0_8 = arith.constant 0 : index
    %14 = vector.load %arg6[%c0_7, %c0_8] : memref<1x1024xf32, #tpu.memory_space<vmem>>, vector<1x1024xf32>
    tpu.vector_store %arg6[%c0_7, %c0_8], %13 {strides = array<i32>} : memref<1x1024xf32, #tpu.memory_space<vmem>>, vector<1x1024xf32>,
    %c0_i32_9 = arith.constant 0 : i32
    %15 = arith.cmpi eq, %arg2, %c0_i32_9 : i32
    %16 = arith.extui %15 : i1 to i32
    %c0_i32_10 = arith.constant 0 : i32
    %17 = arith.cmpi ne, %16, %c0_i32_10 : i32
    scf.if %17 {
      %c0_11 = arith.constant 0 : index
      %c0_12 = arith.constant 0 : index
      %18 = vector.load %arg6[%c0_11, %c0_12] : memref<1x1024xf32, #tpu.memory_space<vmem>>, vector<1x1024xf32>
      %c0_13 = arith.constant 0 : index
      %c0_14 = arith.constant 0 : index
      %c0_15 = arith.constant 0 : index
      %19 = vector.load %arg5[%c0_13, %c0_14, %c0_15] : memref<1x1x1024xf32, #tpu.memory_space<vmem>>, vector<1x1x1024xf32>
      %20 = vector.shape_cast %19 : vector<1x1x1024xf32> to vector<1x1024xf32>
      %21 = vector.shape_cast %18 : vector<1x1024xf32> to vector<1x1x1024xf32>
      tpu.vector_store %arg5[%c0_13, %c0_14, %c0_15], %21 {strides = array<i32>} : memref<1x1x1024xf32, #tpu.memory_space<vmem>>, vector<1x1x1024xf32>,
    } else {
    }
    return
  }
  func.func @transform_0(%arg0: i32, %arg1: i32, %arg2: i32) -> (i32, i32) {
    %c1_i32 = arith.constant 1 : i32
    %0 = arith.muli %arg0, %c1_i32 : i32
    %1 = arith.addi %0, %arg2 : i32
    %c0_i32 = arith.constant 0 : i32
    return %1, %arg1 : i32, i32
  }
  func.func @transform_1(%arg0: i32, %arg1: i32, %arg2: i32) -> (i32, i32) {
    %c1_i32 = arith.constant 1 : i32
    %0 = arith.muli %arg0, %c1_i32 : i32
    %1 = arith.addi %0, %arg2 : i32
    %c0_i32 = arith.constant 0 : i32
    return %1, %arg1 : i32, i32
  }
  func.func @transform_2(%arg0: i32, %arg1: i32, %arg2: i32) -> (i32, i32, i32) {
    %c0_i32 = arith.constant 0 : i32
    %c0_i32_0 = arith.constant 0 : i32
    return %arg0, %c0_i32, %arg1 : i32, i32, i32
  }
}

</mosaic_0001>

<llo_original>
// kernel: tpu_custom_call.1
$region0: #{tpu_custom_call.1}
  #allocation0 [shape = 'u32[]', space=smem, size = 0x4, offset = 0x4, fixed_abs, tag = 'smem constant byte address 0x4 - core index']
  #allocation1 [shape = 'u32[144,128]{1,0:T(1,128)}', space=vmem, size = 0x12000, scoped, tag = 'internal scratch']
  #allocation2 [shape = 'f32[1,1024]{1,0:T(1,128)}', space=vmem, size = 0x1000, scoped, tag = 'scratch operand']
  %s0 = inlined_call_operand.hbm [shape: f32[2,1024], index: 0, kind: input, shape index: {}]
  %s1 = inlined_call_operand.hbm [shape: f32[2,1024], index: 1, kind: input, shape index: {}]
  %s2 = inlined_call_operand.hbm [shape: f32[1,1,1024], index: 2, kind: output, shape index: {}]
  %s3 = sld [smem:[#allocation0]]
  $region34: #{tpu_custom_call.1} parent=0
    _
  %s5 = ssub.s32 1, %s3
  %s6 = scalar_select 0, %s5, %s3
  $region1: #{tpu_custom_call.1} parent=0
    #allocation3 [shape = 'u8[8192]{0}', space=vmem, size = 0x2000, scoped, tag = 'input window, operand 0, single buffered']
    #allocation4 [shape = 's32[1]{0}', space=sflag, size = 0x4, scoped, tag = 'scoped memory for tpu_custom_call.1']
    #allocation5 [shape = 's32[1]{0}', space=sflag, size = 0x4, scoped, tag = 'scoped memory for tpu_custom_call.1']
    #allocation6 [shape = 'u8[8192]{0}', space=vmem, size = 0x2000, scoped, tag = 'input window, operand 1, single buffered']
    #allocation7 [shape = 's32[1]{0}', space=sflag, size = 0x4, scoped, tag = 'scoped memory for tpu_custom_call.1']
    #allocation8 [shape = 'u8[4096]{0}', space=vmem, size = 0x1000, scoped, tag = 'output window, operand 0, single buffered']
    %7 = vsyncpa [#allocation4], 0
    %8 = vsyncpa [#allocation7], 0
    %9 = vsyncpa [#allocation5], 0
    // Predicated region
    $region2: #{tpu_custom_call.1} parent=1 // pred_check
      _
    $region3: #{tpu_custom_call.1} parent=1 // pred_check_branch
      %11 = sbr.rel (0) target = $region5
    $region4: #{tpu_custom_call.1} parent=1 // pred_region
      %s12 = sadd.s32 0, 0
      %s14 = ssub.s32 256, 256
      %15 = vsyncadd [#allocation4], %s14
      %s16 = smul.addr %s12, 8
      %s17 = smul.addr %s16, 32
      %s18 = scalar_lea.hbm %s0, %s17
      %s20 = sshll.u32 [#allocation3], 4
      %s21 = int_to_ptr.vmem [resolvable:$true] %s20
      %23 = dma.hbm_to_vmem [thread:$0]  %s18, 256, %s21, [#allocation4]
    $region5: #{tpu_custom_call.1} parent=1 // pred_fallthru
      _
    // Predicated region
    $region6: #{tpu_custom_call.1} parent=1 // pred_check
      _
    $region7: #{tpu_custom_call.1} parent=1 // pred_check_branch
      %25 = sbr.rel (0) target = $region9
    $region8: #{tpu_custom_call.1} parent=1 // pred_region
      %s26 = sadd.s32 0, 0
      %s28 = ssub.s32 256, 256
      %29 = vsyncadd [#allocation7], %s28
      %s30 = smul.addr %s26, 8
      %s31 = smul.addr %s30, 32
      %s32 = scalar_lea.hbm %s1, %s31
      %s34 = sshll.u32 [#allocation6], 4
      %s35 = int_to_ptr.vmem [resolvable:$true] %s34
      %37 = dma.hbm_to_vmem [thread:$0]  %s32, 256, %s35, [#allocation7]
    $region9: #{tpu_custom_call.1} parent=1 // pred_fallthru
      _
    // Predicated region
    $region10: #{tpu_custom_call.1} parent=1 // pred_check
      _
    $region11: #{tpu_custom_call.1} parent=1 // pred_check_branch
      %39 = sbr.rel (0) target = $region13
    $region12: #{tpu_custom_call.1} parent=1 // pred_region
      %40 = dma.done [#allocation4], 256
    $region13: #{tpu_custom_call.1} parent=1 // pred_fallthru
      _
    // Predicated region
    $region14: #{tpu_custom_call.1} parent=1 // pred_check
      _
    $region15: #{tpu_custom_call.1} parent=1 // pred_check_branch
      %42 = sbr.rel (0) target = $region17
    $region16: #{tpu_custom_call.1} parent=1 // pred_region
      %43 = dma.done [#allocation7], 256
    $region17: #{tpu_custom_call.1} parent=1 // pred_fallthru
      _
    %s44 = sadd.s32 0, 0
    %s45 = sadd.s32 0, 0
    %p46 = scmp.eq.s32.totalorder 0, 0
    // Predicated region
    $region18: #{tpu_custom_call.1} parent=1 // pred_check
      %p47 = pneg %p46
    $region19: #{tpu_custom_call.1} parent=1 // pred_check_branch
      %49 = sbr.rel (%p47) target = $region21
    $region20: #{tpu_custom_call.1} parent=1 // pred_region
      %50 = vst [vmem:[#allocation2] sm:$0xff] 0.0
    $region21: #{tpu_custom_call.1} parent=1 // pred_fallthru
      _
    %v51 = vld [vmem:[#allocation3] sm:$0xff]
    %v52 = vld [vmem:[#allocation3 + $0x8] sm:$0xff]
    %v53 = vld [vmem:[#allocation6] sm:$0xff]
    %v54 = vld [vmem:[#allocation6 + $0x8] sm:$0xff]
    %v55 = vadd.f32 %v51, 1e-12
    %v56 = vadd.f32 %v52, 1e-12
    %v57 = vlog2.pop %v55
    %v58 = vmul.f32 %v57, 0.6931472
    %v59 = vlog2.pop %v56
    %v60 = vmul.f32 %v59, 0.6931472
    %v61 = vmul.f32 %v53, %v58
    %v62 = vmul.f32 %v54, %v60
    %v63 = vsub.f32 %v51, %v61
    %v64 = vsub.f32 %v52, %v62
    %v65 = vld [vmem:[#allocation2] sm:$0xff]
    %v68 = vcombine.high %v63, %v63
    %v70 = vunpack.c.l.s4 1983009808
    %v71 = vunpack.c.0.s8 %v70
    %v72 = vlaneseq
    %v73 = vshrl.u32 %v72, 7
    %v74 = vsub.s32 %v71, %v73
    %v75 = vrot.slane %v63, %v74
    %v77 = vunpack.c.l.s4 1983009808
    %v78 = vunpack.c.0.s8 %v77
    %v79 = vlaneseq
    %v80 = vshrl.u32 %v79, 7
    %v81 = vsub.s32 %v78, %v80
    %v82 = vrot.slane %v68, %v81
    %v83 = vcombine.high %v75, %v75
    %v84 = vcombine.high %v82, %v82
    %v85 = vcombine.high %v64, %v64
    %v87 = vunpack.c.l.s4 1983009808
    %v88 = vunpack.c.0.s8 %v87
    %v89 = vlaneseq
    %v90 = vshrl.u32 %v89, 7
    %v91 = vsub.s32 %v88, %v90
    %v92 = vrot.slane %v64, %v91
    %v94 = vunpack.c.l.s4 1983009808
    %v95 = vunpack.c.0.s8 %v94
    %v96 = vlaneseq
    %v97 = vshrl.u32 %v96, 7
    %v98 = vsub.s32 %v95, %v97
    %v99 = vrot.slane %v85, %v98
    %v100 = vcombine.high %v92, %v92
    %v101 = vcombine.high %v99, %v99
    %vm110 = vcmask 1041408
    %v111 = vsel %vm110, %v75, 0.0
    %v112 = vrot.slane %v111, 4
    %v113 = vadd.f32 %v111, %v112
    %v114 = vrot.slane %v113, 2
    %v115 = vadd.f32 %v113, %v114
    %v116 = vrot.slane %v115, 1
    %v117 = vadd.f32 %v115, %v116
    %v118 = vsel %vm110, %v83, 0.0
    %v119 = vrot.slane %v118, 4
    %v120 = vadd.f32 %v118, %v119
    %v121 = vrot.slane %v120, 2
    %v122 = vadd.f32 %v120, %v121
    %v123 = vrot.slane %v122, 1
    %v124 = vadd.f32 %v122, %v123
    %v125 = vsel %vm110, %v82, 0.0
    %v126 = vrot.slane %v125, 4
    %v127 = vadd.f32 %v125, %v126
    %v128 = vrot.slane %v127, 2
    %v129 = vadd.f32 %v127, %v128
    %v130 = vrot.slane %v129, 1
    %v131 = vadd.f32 %v129, %v130
    %v132 = vsel %vm110, %v84, 0.0
    %v133 = vrot.slane %v132, 4
    %v134 = vadd.f32 %v132, %v133
    %v135 = vrot.slane %v134, 2
    %v136 = vadd.f32 %v134, %v135
    %v137 = vrot.slane %v136, 1
    %v138 = vadd.f32 %v136, %v137
    %v139 = vsel %vm110, %v92, 0.0
    %v140 = vrot.slane %v139, 4
    %v141 = vadd.f32 %v139, %v140
    %v142 = vrot.slane %v141, 2
    %v143 = vadd.f32 %v141, %v142
    %v144 = vrot.slane %v143, 1
    %v145 = vadd.f32 %v143, %v144
    %v146 = vsel %vm110, %v100, 0.0
    %v147 = vrot.slane %v146, 4
    %v148 = vadd.f32 %v146, %v147
    %v149 = vrot.slane %v148, 2
    %v150 = vadd.f32 %v148, %v149
    %v151 = vrot.slane %v150, 1
    %v152 = vadd.f32 %v150, %v151
    %v153 = vsel %vm110, %v99, 0.0
    %v154 = vrot.slane %v153, 4
    %v155 = vadd.f32 %v153, %v154
    %v156 = vrot.slane %v155, 2
    %v157 = vadd.f32 %v155, %v156
    %v158 = vrot.slane %v157, 1
    %v159 = vadd.f32 %v157, %v158
    %v160 = vsel %vm110, %v101, 0.0
    %v161 = vrot.slane %v160, 4
    %v162 = vadd.f32 %v160, %v161
    %v163 = vrot.slane %v162, 2
    %v164 = vadd.f32 %v162, %v163
    %v165 = vrot.slane %v164, 1
    %v166 = vadd.f32 %v164, %v165
    %v175 = vcombine.low %v117, %v124
    %v176 = vcombine.low %v131, %v138
    %v177 = vcombine.low %v145, %v152
    %v178 = vcombine.low %v159, %v166
    %v180 = vunpack.c.l.s4 1966171168
    %v181 = vunpack.c.0.s8 %v180
    %v182 = vlaneseq
    %v183 = vshrl.u32 %v182, 7
    %v184 = vsub.s32 %v181, %v183
    %v185 = vrot.slane %v175, %v184
    %v187 = vunpack.c.l.s4 1966171168
    %v188 = vunpack.c.0.s8 %v187
    %v189 = vlaneseq
    %v190 = vshrl.u32 %v189, 7
    %v191 = vsub.s32 %v188, %v190
    %v192 = vrot.slane %v176, %v191
    %v194 = vunpack.c.l.s4 1966171168
    %v195 = vunpack.c.0.s8 %v194
    %v196 = vlaneseq
    %v197 = vshrl.u32 %v196, 7
    %v198 = vsub.s32 %v195, %v197
    %v199 = vrot.slane %v177, %v198
    %v201 = vunpack.c.l.s4 1966171168
    %v202 = vunpack.c.0.s8 %v201
    %v203 = vlaneseq
    %v204 = vshrl.u32 %v203, 7
    %v205 = vsub.s32 %v202, %v204
    %v206 = vrot.slane %v178, %v205
    %v207 = vcombine.low %v185, %v192
    %v208 = vcombine.low %v199, %v206
    %v210 = vunpack.c.l.s4 1966171168
    %v211 = vunpack.c.0.s8 %v210
    %v212 = vlaneseq
    %v213 = vshrl.u32 %v212, 7
    %v214 = vsub.s32 %v211, %v213
    %v215 = vrot.slane %v207, %v214
    %v217 = vunpack.c.l.s4 1966171168
    %v218 = vunpack.c.0.s8 %v217
    %v219 = vlaneseq
    %v220 = vshrl.u32 %v219, 7
    %v221 = vsub.s32 %v218, %v220
    %v222 = vrot.slane %v208, %v221
    %v223 = vcombine.low %v215, %v222
    %v225 = vadd.f32 %v65, %v223
    %226 = vst [vmem:[#allocation2] sm:$0xff] %v225
    // Predicated region
    $region22: #{tpu_custom_call.1} parent=1 // pred_check
      %p227 = pneg %p46
    $region23: #{tpu_custom_call.1} parent=1 // pred_check_branch
      %229 = sbr.rel (%p227) target = $region25
    $region24: #{tpu_custom_call.1} parent=1 // pred_region
      %v230 = vld [vmem:[#allocation2] sm:$0xff]
      %231 = vst [vmem:[#allocation8] sm:$0xff] %v230
    $region25: #{tpu_custom_call.1} parent=1 // pred_fallthru
      _
    // Predicated region
    $region26: #{tpu_custom_call.1} parent=1 // pred_check
      _
    $region27: #{tpu_custom_call.1} parent=1 // pred_check_branch
      %233 = sbr.rel (0) target = $region29
    $region28: #{tpu_custom_call.1} parent=1 // pred_region
      %s235 = ssub.s32 128, 128
      %236 = vsyncadd [#allocation5], %s235
      %s238 = sshll.u32 [#allocation8], 4
      %s239 = int_to_ptr.vmem [resolvable:$true] %s238
      %241 = dma.vmem_to_hbm [thread:$0]  %s239, 128, %s2, [#allocation5]
    $region29: #{tpu_custom_call.1} parent=1 // pred_fallthru
      _
    // Predicated region
    $region30: #{tpu_custom_call.1} parent=1 // pred_check
      _
    $region31: #{tpu_custom_call.1} parent=1 // pred_check_branch
      %243 = sbr.rel (0) target = $region33
    $region32: #{tpu_custom_call.1} parent=1 // pred_region
      %244 = dma.done [#allocation5], 128
    $region33: #{tpu_custom_call.1} parent=1 // pred_fallthru
      _
    %245 = vsyncpa [#allocation4], 1
    %246 = vsyncpa [#allocation7], 1
    %247 = vsyncpa [#allocation5], 1

// kernel: tpu_custom_call.1
$region0: #{tpu_custom_call.1}
  #allocation0 [shape = 'u32[]', space=smem, size = 0x4, offset = 0x4, fixed_abs, tag = 'smem constant byte address 0x4 - core index']
  #allocation1 [shape = 'u32[144,128]{1,0:T(1,128)}', space=vmem, size = 0x12000, scoped, tag = 'internal scratch']
  #allocation2 [shape = 'f32[1,1024]{1,0:T(1,128)}', space=vmem, size = 0x1000, scoped, tag = 'scratch operand']
  %s0 = inlined_call_operand.hbm [shape: f32[2,1024], index: 0, kind: input, shape index: {}]
  %s1 = inlined_call_operand.hbm [shape: f32[2,1024], index: 1, kind: input, shape index: {}]
  %s2 = inlined_call_operand.hbm [shape: f32[1,1,1024], index: 2, kind: output, shape index: {}]
  %s3 = sld [smem:[#allocation0]]
  $region34: #{tpu_custom_call.1} parent=0
    _
  %s5 = ssub.s32 1, %s3
  %s6 = scalar_select 0, %s5, %s3
  $region1: #{tpu_custom_call.1} parent=0
    #allocation3 [shape = 'u8[8192]{0}', space=vmem, size = 0x2000, scoped, tag = 'input window, operand 0, single buffered']
    #allocation4 [shape = 's32[1]{0}', space=sflag, size = 0x4, scoped, tag = 'scoped memory for tpu_custom_call.1']
    #allocation5 [shape = 's32[1]{0}', space=sflag, size = 0x4, scoped, tag = 'scoped memory for tpu_custom_call.1']
    #allocation6 [shape = 'u8[8192]{0}', space=vmem, size = 0x2000, scoped, tag = 'input window, operand 1, single buffered']
    #allocation7 [shape = 's32[1]{0}', space=sflag, size = 0x4, scoped, tag = 'scoped memory for tpu_custom_call.1']
    #allocation8 [shape = 'u8[4096]{0}', space=vmem, size = 0x1000, scoped, tag = 'output window, operand 0, single buffered']
    %7 = vsyncpa [#allocation4], 0
    %8 = vsyncpa [#allocation7], 0
    %9 = vsyncpa [#allocation5], 0
    // Predicated region
    $region2: #{tpu_custom_call.1} parent=1 // pred_check
      _
    $region3: #{tpu_custom_call.1} parent=1 // pred_check_branch
      %11 = sbr.rel (0) target = $region5
    $region4: #{tpu_custom_call.1} parent=1 // pred_region
      %s12 = sadd.s32 0, 0
      %s14 = ssub.s32 256, 256
      %15 = vsyncadd [#allocation4], %s14
      %s16 = smul.addr %s12, 8
      %s17 = smul.addr %s16, 32
      %s18 = scalar_lea.hbm %s0, %s17
      %s20 = sshll.u32 [#allocation3], 4
      %s21 = int_to_ptr.vmem [resolvable:$true] %s20
      %23 = dma.hbm_to_vmem [thread:$0]  %s18, 256, %s21, [#allocation4]
    $region5: #{tpu_custom_call.1} parent=1 // pred_fallthru
      _
    // Predicated region
    $region6: #{tpu_custom_call.1} parent=1 // pred_check
      _
    $region7: #{tpu_custom_call.1} parent=1 // pred_check_branch
      %25 = sbr.rel (0) target = $region9
    $region8: #{tpu_custom_call.1} parent=1 // pred_region
      %s26 = sadd.s32 0, 0
      %s28 = ssub.s32 256, 256
      %29 = vsyncadd [#allocation7], %s28
      %s30 = smul.addr %s26, 8
      %s31 = smul.addr %s30, 32
      %s32 = scalar_lea.hbm %s1, %s31
      %s34 = sshll.u32 [#allocation6], 4
      %s35 = int_to_ptr.vmem [resolvable:$true] %s34
      %37 = dma.hbm_to_vmem [thread:$0]  %s32, 256, %s35, [#allocation7]
    $region9: #{tpu_custom_call.1} parent=1 // pred_fallthru
      _
    // Predicated region
    $region10: #{tpu_custom_call.1} parent=1 // pred_check
      _
    $region11: #{tpu_custom_call.1} parent=1 // pred_check_branch
      %39 = sbr.rel (0) target = $region13
    $region12: #{tpu_custom_call.1} parent=1 // pred_region
      %40 = dma.done [#allocation4], 256
    $region13: #{tpu_custom_call.1} parent=1 // pred_fallthru
      _
    // Predicated region
    $region14: #{tpu_custom_call.1} parent=1 // pred_check
      _
    $region15: #{tpu_custom_call.1} parent=1 // pred_check_branch
      %42 = sbr.rel (0) target = $region17
    $region16: #{tpu_custom_call.1} parent=1 // pred_region
      %43 = dma.done [#allocation7], 256
    $region17: #{tpu_custom_call.1} parent=1 // pred_fallthru
      _
    %s44 = sadd.s32 0, 0
    %s45 = sadd.s32 0, 0
    %p46 = scmp.eq.s32.totalorder 0, 0
    // Predicated region
    $region18: #{tpu_custom_call.1} parent=1 // pred_check
      %p47 = pneg %p46
    $region19: #{tpu_custom_call.1} parent=1 // pred_check_branch
      %49 = sbr.rel (%p47) target = $region21
    $region20: #{tpu_custom_call.1} parent=1 // pred_region
      %50 = vst [vmem:[#allocation2] sm:$0xff] 0.0
    $region21: #{tpu_custom_call.1} parent=1 // pred_fallthru
      _
    %v51 = vld [vmem:[#allocation3] sm:$0xff]
    %v52 = vld [vmem:[#allocation3 + $0x8] sm:$0xff]
    %v53 = vld [vmem:[#allocation6] sm:$0xff]
    %v54 = vld [vmem:[#allocation6 + $0x8] sm:$0xff]
    %v55 = vadd.f32 %v51, 1e-12
    %v56 = vadd.f32 %v52, 1e-12
    %v57 = vlog2.pop %v55
    %v58 = vmul.f32 %v57, 0.6931472
    %v59 = vlog2.pop %v56
    %v60 = vmul.f32 %v59, 0.6931472
    %v61 = vmul.f32 %v53, %v58
    %v62 = vmul.f32 %v54, %v60
    %v63 = vsub.f32 %v51, %v61
    %v64 = vsub.f32 %v52, %v62
    %v65 = vld [vmem:[#allocation2] sm:$0xff]
    %v68 = vcombine.high %v63, %v63
    %v70 = vunpack.c.l.s4 1983009808
    %v71 = vunpack.c.0.s8 %v70
    %v72 = vlaneseq
    %v73 = vshrl.u32 %v72, 7
    %v74 = vsub.s32 %v71, %v73
    %v75 = vrot.slane %v63, %v74
    %v77 = vunpack.c.l.s4 1983009808
    %v78 = vunpack.c.0.s8 %v77
    %v79 = vlaneseq
    %v80 = vshrl.u32 %v79, 7
    %v81 = vsub.s32 %v78, %v80
    %v82 = vrot.slane %v68, %v81
    %v83 = vcombine.high %v75, %v75
    %v84 = vcombine.high %v82, %v82
    %v85 = vcombine.high %v64, %v64
    %v87 = vunpack.c.l.s4 1983009808
    %v88 = vunpack.c.0.s8 %v87
    %v89 = vlaneseq
    %v90 = vshrl.u32 %v89, 7
    %v91 = vsub.s32 %v88, %v90
    %v92 = vrot.slane %v64, %v91
    %v94 = vunpack.c.l.s4 1983009808
    %v95 = vunpack.c.0.s8 %v94
    %v96 = vlaneseq
    %v97 = vshrl.u32 %v96, 7
    %v98 = vsub.s32 %v95, %v97
    %v99 = vrot.slane %v85, %v98
    %v100 = vcombine.high %v92, %v92
    %v101 = vcombine.high %v99, %v99
    %vm110 = vcmask 1041408
    %v111 = vsel %vm110, %v75, 0.0
    %v112 = vrot.slane %v111, 4
    %v113 = vadd.f32 %v111, %v112
    %v114 = vrot.slane %v113, 2
    %v115 = vadd.f32 %v113, %v114
    %v116 = vrot.slane %v115, 1
    %v117 = vadd.f32 %v115, %v116
    %v118 = vsel %vm110, %v83, 0.0
    %v119 = vrot.slane %v118, 4
    %v120 = vadd.f32 %v118, %v119
    %v121 = vrot.slane %v120, 2
    %v122 = vadd.f32 %v120, %v121
    %v123 = vrot.slane %v122, 1
    %v124 = vadd.f32 %v122, %v123
    %v125 = vsel %vm110, %v82, 0.0
    %v126 = vrot.slane %v125, 4
    %v127 = vadd.f32 %v125, %v126
    %v128 = vrot.slane %v127, 2
    %v129 = vadd.f32 %v127, %v128
    %v130 = vrot.slane %v129, 1
    %v131 = vadd.f32 %v129, %v130
    %v132 = vsel %vm110, %v84, 0.0
    %v133 = vrot.slane %v132, 4
    %v134 = vadd.f32 %v132, %v133
    %v135 = vrot.slane %v134, 2
    %v136 = vadd.f32 %v134, %v135
    %v137 = vrot.slane %v136, 1
    %v138 = vadd.f32 %v136, %v137
    %v139 = vsel %vm110, %v92, 0.0
    %v140 = vrot.slane %v139, 4
    %v141 = vadd.f32 %v139, %v140
    %v142 = vrot.slane %v141, 2
    %v143 = vadd.f32 %v141, %v142
    %v144 = vrot.slane %v143, 1
    %v145 = vadd.f32 %v143, %v144
    %v146 = vsel %vm110, %v100, 0.0
    %v147 = vrot.slane %v146, 4
    %v148 = vadd.f32 %v146, %v147
    %v149 = vrot.slane %v148, 2
    %v150 = vadd.f32 %v148, %v149
    %v151 = vrot.slane %v150, 1
    %v152 = vadd.f32 %v150, %v151
    %v153 = vsel %vm110, %v99, 0.0
    %v154 = vrot.slane %v153, 4
    %v155 = vadd.f32 %v153, %v154
    %v156 = vrot.slane %v155, 2
    %v157 = vadd.f32 %v155, %v156
    %v158 = vrot.slane %v157, 1
    %v159 = vadd.f32 %v157, %v158
    %v160 = vsel %vm110, %v101, 0.0
    %v161 = vrot.slane %v160, 4
    %v162 = vadd.f32 %v160, %v161
    %v163 = vrot.slane %v162, 2
    %v164 = vadd.f32 %v162, %v163
    %v165 = vrot.slane %v164, 1
    %v166 = vadd.f32 %v164, %v165
    %v175 = vcombine.low %v117, %v124
    %v176 = vcombine.low %v131, %v138
    %v177 = vcombine.low %v145, %v152
    %v178 = vcombine.low %v159, %v166
    %v180 = vunpack.c.l.s4 1966171168
    %v181 = vunpack.c.0.s8 %v180
    %v182 = vlaneseq
    %v183 = vshrl.u32 %v182, 7
    %v184 = vsub.s32 %v181, %v183
    %v185 = vrot.slane %v175, %v184
    %v187 = vunpack.c.l.s4 1966171168
    %v188 = vunpack.c.0.s8 %v187
    %v189 = vlaneseq
    %v190 = vshrl.u32 %v189, 7
    %v191 = vsub.s32 %v188, %v190
    %v192 = vrot.slane %v176, %v191
    %v194 = vunpack.c.l.s4 1966171168
    %v195 = vunpack.c.0.s8 %v194
    %v196 = vlaneseq
    %v197 = vshrl.u32 %v196, 7
    %v198 = vsub.s32 %v195, %v197
    %v199 = vrot.slane %v177, %v198
    %v201 = vunpack.c.l.s4 1966171168
    %v202 = vunpack.c.0.s8 %v201
    %v203 = vlaneseq
    %v204 = vshrl.u32 %v203, 7
    %v205 = vsub.s32 %v202, %v204
    %v206 = vrot.slane %v178, %v205
    %v207 = vcombine.low %v185, %v192
    %v208 = vcombine.low %v199, %v206
    %v210 = vunpack.c.l.s4 1966171168
    %v211 = vunpack.c.0.s8 %v210
    %v212 = vlaneseq
    %v213 = vshrl.u32 %v212, 7
    %v214 = vsub.s32 %v211, %v213
    %v215 = vrot.slane %v207, %v214
    %v217 = vunpack.c.l.s4 1966171168
    %v218 = vunpack.c.0.s8 %v217
    %v219 = vlaneseq
    %v220 = vshrl.u32 %v219, 7
    %v221 = vsub.s32 %v218, %v220
    %v222 = vrot.slane %v208, %v221
    %v223 = vcombine.low %v215, %v222
    %v225 = vadd.f32 %v65, %v223
    %226 = vst [vmem:[#allocation2] sm:$0xff] %v225
    // Predicated region
    $region22: #{tpu_custom_call.1} parent=1 // pred_check
      %p227 = pneg %p46
    $region23: #{tpu_custom_call.1} parent=1 // pred_check_branch
      %229 = sbr.rel (%p227) target = $region25
    $region24: #{tpu_custom_call.1} parent=1 // pred_region
      %v230 = vld [vmem:[#allocation2] sm:$0xff]
      %231 = vst [vmem:[#allocation8] sm:$0xff] %v230
    $region25: #{tpu_custom_call.1} parent=1 // pred_fallthru
      _
    // Predicated region
    $region26: #{tpu_custom_call.1} parent=1 // pred_check
      _
    $region27: #{tpu_custom_call.1} parent=1 // pred_check_branch
      %233 = sbr.rel (0) target = $region29
    $region28: #{tpu_custom_call.1} parent=1 // pred_region
      %s235 = ssub.s32 128, 128
      %236 = vsyncadd [#allocation5], %s235
      %s238 = sshll.u32 [#allocation8], 4
      %s239 = int_to_ptr.vmem [resolvable:$true] %s238
      %241 = dma.vmem_to_hbm [thread:$0]  %s239, 128, %s2, [#allocation5]
    $region29: #{tpu_custom_call.1} parent=1 // pred_fallthru
      _
    // Predicated region
    $region30: #{tpu_custom_call.1} parent=1 // pred_check
      _
    $region31: #{tpu_custom_call.1} parent=1 // pred_check_branch
      %243 = sbr.rel (0) target = $region33
    $region32: #{tpu_custom_call.1} parent=1 // pred_region
      %244 = dma.done [#allocation5], 128
    $region33: #{tpu_custom_call.1} parent=1 // pred_fallthru
      _
    %245 = vsyncpa [#allocation4], 1
    %246 = vsyncpa [#allocation7], 1
    %247 = vsyncpa [#allocation5], 1

</llo_original>
